<compile_context>
chip_gen: v7x
topology: tpu7x:2x2x1
jax: 0.10.0
libtpu: 0.0.40
codegen_flags: <defaults>
</compile_context>

<pallas_src>
import math

import jax
import jax.numpy as jnp
from jax.experimental import pallas as pl
from jax.experimental.pallas import tpu as pltpu


def _round_up(x, m):
    return ((x + m - 1) // m) * m


# ----------------------------------------------------------------------------
# Kernel 1: node projection + folded gate scalars
#   h2 = feat @ W2^T          (fc2, bias=False)
#   g  = h2 @ [u1, u2, u3]    (per-node vec_a-folded gate terms)
# ----------------------------------------------------------------------------
def _node_proj_kernel(feat_ref, w_ref, u_ref, h2_ref, g_ref):
    h2 = jnp.dot(feat_ref[...], w_ref[...], preferred_element_type=jnp.float32)
    h2_ref[...] = h2.astype(h2_ref.dtype)
    g_ref[...] = jnp.dot(h2, u_ref[...],
                         preferred_element_type=jnp.float32).astype(g_ref.dtype)


def node_projection_and_gate(feat, w_t, u_mat, *, tile=512):
    """feat: [N, in_f], w_t: [in_f, F], u_mat: [F, 3] -> (h2 [N,F], g [N,3])."""
    n, in_f = feat.shape
    f = w_t.shape[1]
    ng = u_mat.shape[1]

    tm = min(tile, _round_up(n, 8))
    # Prefer >=2 grid steps: lets v7x's 2 TCs split the rows and gives the
    # auto-pipeline something to overlap.
    while tm > 8 and pl.cdiv(_round_up(n, 8), tm) < 2:
        tm = _round_up(tm // 2, 8)
    n_pad = _round_up(n, tm)
    if n_pad != n:
        feat = jnp.pad(feat, ((0, n_pad - n), (0, 0)))

    # NOTE: resident weights are tiny here; pipeline_mode=pl.Buffered(1) would
    # halve their footprint for large F (v7x 64 MiB VMEM) but is noise at F=32.
    h2, g = pl.pallas_call(
        _node_proj_kernel,
        out_shape=(jax.ShapeDtypeStruct((n_pad, f), jnp.float32),
                   jax.ShapeDtypeStruct((n_pad, ng), jnp.float32)),
        grid=(n_pad // tm,),
        in_specs=[
            pl.BlockSpec((tm, in_f), lambda i: (i, 0)),   # streamed node rows
            pl.BlockSpec((in_f, f), lambda i: (0, 0)),    # resident fc2 weight
            pl.BlockSpec((f, ng), lambda i: (0, 0)),      # resident folded vec_a cols
        ],
        out_specs=(pl.BlockSpec((tm, f), lambda i: (i, 0)),
                   pl.BlockSpec((tm, ng), lambda i: (i, 0))),
        compiler_params=pltpu.CompilerParams(
            dimension_semantics=("parallel",),
            vmem_limit_bytes=32 * 1024 * 1024),
        cost_estimate=pl.CostEstimate(
            flops=2 * n_pad * f * (in_f + ng),
            transcendentals=0,
            bytes_accessed=4 * (n_pad * (in_f + f + ng) + in_f * f + f * ng)),
    )(feat, w_t, u_mat)
    return h2[:n], g[:n]


# ----------------------------------------------------------------------------
# Kernel 2: fused edge message (pure streaming, lane-dense over edges)
#   he[:, e] = coef[e] * (sigmoid(s[e]) * h2_src[:, e] + h1_mid[:, e])
# ----------------------------------------------------------------------------
def _edge_msg_kernel(sc_ref, h2s_ref, h1m_ref, out_ref):
    sc = sc_ref[...]                       # [2, TE]: row0 = gate score, row1 = coef
    beta = jax.nn.sigmoid(sc[0:1, :])      # [1, TE]  (EUP)
    coef = sc[1:2, :]                      # [1, TE]  d0_dst * d2_src
    out_ref[...] = (coef * (beta * h2s_ref[...] + h1m_ref[...])
                    ).astype(out_ref.dtype)


def edge_messages(packed, h2_src_t, h1_mid_t, *, tile=2048):
    """packed: [2, E], h2_src_t / h1_mid_t: [F, E] -> he_t: [F, E]."""
    f, e = h2_src_t.shape

    te = min(tile, _round_up(e, 128))
    # Keep >=2 grid steps (v7x 2-TC split + DMA/compute overlap).
    while te > 128 and pl.cdiv(_round_up(e, 128), te) < 2:
        te = _round_up(te // 2, 128)
    e_pad = _round_up(e, te)
    if e_pad != e:
        pad_cols = ((0, 0), (0, e_pad - e))
        packed = jnp.pad(packed, pad_cols)       # coef pads to 0 -> he pads to 0
        h2_src_t = jnp.pad(h2_src_t, pad_cols)
        h1_mid_t = jnp.pad(h1_mid_t, pad_cols)

    def edge_cols(rows):
        return pl.BlockSpec((rows, te), lambda i: (0, i))

    # TODO(synk): on v6e/v7x the [F,E] streams could be bf16 (f32 gate accum)
    # for ~2x HBM traffic reduction; kept f32 so the 1e-3 check holds on all gens.
    out = pl.pallas_call(
        _edge_msg_kernel,
        out_shape=jax.ShapeDtypeStruct((f, e_pad), jnp.float32),
        grid=(e_pad // te,),
        in_specs=[edge_cols(2), edge_cols(f), edge_cols(f)],
        out_specs=edge_cols(f),
        compiler_params=pltpu.CompilerParams(
            dimension_semantics=("parallel",),
            vmem_limit_bytes=32 * 1024 * 1024),
        cost_estimate=pl.CostEstimate(
            flops=3 * e_pad * f,
            transcendentals=e_pad,
            bytes_accessed=4 * e_pad * (3 * f + 2)),
    )(packed, h2_src_t, h1_mid_t)
    return out[:, :e]


# ----------------------------------------------------------------------------
# Full forward (hop1_fc=False, elem_gate=False)
# ----------------------------------------------------------------------------
def two_hop_conv_forward(feat, loc, src, dst, mid,
                         boundaries, embed_table,
                         w_fc2, w_fcd, w_w1, w_w2, w_a,
                         activation=jax.nn.relu,
                         node_tile=512, edge_tile=2048):
    n = feat.shape[0]
    e = src.shape[0]
    f = w_fc2.shape[0]
    hp = jax.lax.Precision.HIGHEST

    # ---- constant weight folding (edge-independent, done once) -------------
    # elem_gate=False: scores are only used as (w1 + w2) @ vec_a, so fold
    # vec_a into every gate weight:  (X @ W.T) @ a == X @ (W.T @ a).
    a_vec = w_a.reshape(f)
    u1 = jnp.dot(w_w1[:, :f].T, a_vec, precision=hp)   # dst-side gate column [F]
    u2 = jnp.dot(w_w2[:, :f].T, a_vec, precision=hp)   # mid-side gate column [F]
    u3 = jnp.dot(w_w2[:, f:].T, a_vec, precision=hp)   # src-side gate column [F]
    u_mat = jnp.stack([u1, u2, u3], axis=1)            # [F, 3]
    # dist_embed -> fcd -> fc_w1 (2nd half) -> vec_a, folded to one [NB+1] column
    t_col = jnp.dot(jnp.dot(jnp.dot(embed_table, w_fcd.T, precision=hp),
                            w_w1[:, f:].T, precision=hp),
                    a_vec, precision=hp)

    # TODO(synk): feat_drop (nn.Dropout) omitted — inference / p=0 path.
    h2, g = node_projection_and_gate(feat, w_fc2.T, u_mat, tile=node_tile)
    h1 = h2                                             # hop1_fc=False

    # Degree normalisation (DGL in_/out_degrees, clamp(min=1) ** -0.5) — XLA.
    ones = jnp.ones((e,), jnp.float32)
    indeg = jax.ops.segment_sum(ones, dst, num_segments=n)
    outdeg = jax.ops.segment_sum(ones, src, num_segments=n)
    d0 = jnp.maximum(indeg, 1.0) ** -0.5
    d2 = jnp.maximum(outdeg, 1.0) ** -0.5

    # cal_dist (tiny [E,3] math) + per-edge gate scalar + degree coef, all
    # collapsed into one lane-packed [2, E] operand for the edge kernel.
    diff = loc[dst] - loc[src]
    dist = jnp.sqrt(jnp.sum(diff * diff, axis=1))
    bucket = jnp.sum(dist[:, None] > boundaries[None, :], axis=1)   # torch.bucketize
    s_pre = g[dst, 0] + g[mid, 1] + g[src, 2] + t_col[bucket]       # [E]
    coef = d0[dst] * d2[src]                                        # [E]
    packed = jnp.stack([s_pre, coef], axis=0)                       # [2, E]

    # TODO(synk): per-edge node gathers and the final per-dst scatter-add are
    # data-dependent and left to XLA; fusing them into the edge kernel needs a
    # manual make_async_copy gather / scatter with scalar-prefetched indices.
    h2_src_t = jnp.take(h2, src, axis=0).T                          # [F, E] lane-dense
    h1_mid_t = jnp.take(h1, mid, axis=0).T                          # [F, E] lane-dense

    he_t = edge_messages(packed, h2_src_t, h1_mid_t, tile=edge_tile)   # [F, E]

    # update_all(copy_edge('he'), sum) -> per-destination sum.
    x = jax.ops.segment_sum(he_t.T, dst, num_segments=n)
    if activation is not None:
        x = activation(x)
    return x


# ----------------------------------------------------------------------------
# Pure-JAX reference mirroring the PyTorch forward
# ----------------------------------------------------------------------------
def reference_forward(feat, loc, src, dst, mid, boundaries, embed_table,
                      w_fc2, w_fcd, w_w1, w_w2, w_a, activation):
    hp = jax.lax.Precision.HIGHEST
    n = feat.shape[0]
    h2 = jnp.dot(feat, w_fc2.T, precision=hp)
    h1 = h2
    dist = jnp.sqrt(jnp.sum((loc[dst] - loc[src]) ** 2, axis=1))
    bucket = jnp.sum(dist[:, None] > boundaries[None, :], axis=1)   # bucketize
    demb = jnp.dot(embed_table[bucket], w_fcd.T, precision=hp)
    w1 = jnp.dot(jnp.concatenate([h2[dst], demb], axis=1), w_w1.T, precision=hp)
    w2 = jnp.dot(jnp.concatenate([h1[mid], h2[src]], axis=1), w_w2.T, precision=hp)
    scores = jnp.dot(w1 + w2, w_a.T, precision=hp)
    beta = jax.nn.sigmoid(scores)
    indeg = jax.ops.segment_sum(jnp.ones_like(dist), dst, num_segments=n)
    outdeg = jax.ops.segment_sum(jnp.ones_like(dist), src, num_segments=n)
    d0 = jnp.maximum(indeg, 1.0) ** -0.5
    d2 = jnp.maximum(outdeg, 1.0) ** -0.5
    he = (d0[dst] * d2[src])[:, None] * (beta * h2[src] + h1[mid])
    x = jax.ops.segment_sum(he, dst, num_segments=n)
    if activation is not None:
        x = activation(x)
    return x


def xavier_uniform(key, shape_out_in):
    fan_out, fan_in = shape_out_in
    limit = math.sqrt(6.0 / (fan_in + fan_out))
    return jax.random.uniform(key, shape_out_in, jnp.float32, -limit, limit)


if __name__ == "__main__":
    N, E = 64, 256
    IN_FEATS, OUT_FEATS, DIST_DIM, LOC_DIM = 16, 32, 8, 3
    NUM_BOUNDARIES = 7

    key = jax.random.PRNGKey(0)
    ks = jax.random.split(key, 11)

    feat = jax.random.normal(ks[0], (N, IN_FEATS), jnp.float32)
    loc = jax.random.uniform(ks[1], (N, LOC_DIM), jnp.float32, minval=0.0, maxval=4.0)
    src = jax.random.randint(ks[2], (E,), 0, N)
    dst = jax.random.randint(ks[3], (E,), 0, N)
    mid = jax.random.randint(ks[4], (E,), 0, N)     # graph.edata['mid']
    boundaries = jnp.linspace(0.5, 4.0, NUM_BOUNDARIES).astype(jnp.float32)
    embed_table = jax.random.normal(ks[5], (NUM_BOUNDARIES + 1, DIST_DIM), jnp.float32)

    # reset_parameters(): xavier_uniform_ on all weights (bias=False everywhere).
    w_fc2 = xavier_uniform(ks[6], (OUT_FEATS, IN_FEATS))
    w_fcd = xavier_uniform(ks[7], (OUT_FEATS, DIST_DIM))
    w_w1 = xavier_uniform(ks[8], (OUT_FEATS, 2 * OUT_FEATS))
    w_w2 = xavier_uniform(ks[9], (OUT_FEATS, 2 * OUT_FEATS))
    w_a = xavier_uniform(ks[10], (1, OUT_FEATS))

    out = two_hop_conv_forward(feat, loc, src, dst, mid, boundaries, embed_table,
                               w_fc2, w_fcd, w_w1, w_w2, w_a,
                               activation=jax.nn.relu)
    out = jax.block_until_ready(out)

    ref = reference_forward(feat, loc, src, dst, mid, boundaries, embed_table,
                            w_fc2, w_fcd, w_w1, w_w2, w_a, jax.nn.relu)

    assert out.shape == (N, OUT_FEATS)
    assert jnp.allclose(out, ref, atol=1e-3, rtol=1e-3), \
        float(jnp.max(jnp.abs(out - ref)))

    print("KERNEL_OK")
</pallas_src>

<mosaic_0001>
module attributes {stable_mosaic.version = 11 : i64} {
  func.func @_node_proj_kernel(%arg0: i32, %arg1: memref<32x16xf32, #tpu.memory_space<vmem>>, %arg2: memref<16x32xf32, #tpu.memory_space<vmem>>, %arg3: memref<32x3xf32, #tpu.memory_space<vmem>>, %arg4: memref<32x32xf32, #tpu.memory_space<vmem>>, %arg5: memref<32x3xf32, #tpu.memory_space<vmem>>) attributes {dimension_semantics = [#tpu.dimension_semantics<parallel>], iteration_bounds = array<i64: 2>, scalar_prefetch = 0 : i64, scratch_operands = 0 : i64, tpu.core_type = #tpu.core_type<tc>, window_params = [{transform_indices = @transform_0, window_bounds = array<i64: 32, 16>}, {pipeline_mode = #tpu.pipeline_mode<synchronous>, transform_indices = @transform_1, window_bounds = array<i64: 16, 32>}, {pipeline_mode = #tpu.pipeline_mode<synchronous>, transform_indices = @transform_2, window_bounds = array<i64: 32, 3>}, {transform_indices = @transform_3, window_bounds = array<i64: 32, 32>}, {transform_indices = @transform_4, window_bounds = array<i64: 32, 3>}]} {
    %c0 = arith.constant 0 : index
    %c0_0 = arith.constant 0 : index
    %0 = vector.load %arg1[%c0, %c0_0] : memref<32x16xf32, #tpu.memory_space<vmem>>, vector<32x16xf32>
    %c0_1 = arith.constant 0 : index
    %c0_2 = arith.constant 0 : index
    %1 = vector.load %arg2[%c0_1, %c0_2] : memref<16x32xf32, #tpu.memory_space<vmem>>, vector<16x32xf32>
    %cst = arith.constant dense<0.000000e+00> : vector<32x32xf32>
    %2 = tpu.matmul %0, %1, %cst {dimension_numbers = #tpu.dot_dimension_numbers<[1], [0], [0], [1], [0, 0, 1, 1], [], []>} : vector<32x16xf32>, vector<16x32xf32>, vector<32x32xf32> -> vector<32x32xf32>
    %c0_3 = arith.constant 0 : index
    %c0_4 = arith.constant 0 : index
    %3 = vector.load %arg4[%c0_3, %c0_4] : memref<32x32xf32, #tpu.memory_space<vmem>>, vector<32x32xf32>
    tpu.vector_store %arg4[%c0_3, %c0_4], %2 {strides = array<i32>} : memref<32x32xf32, #tpu.memory_space<vmem>>, vector<32x32xf32>,
    %c0_5 = arith.constant 0 : index
    %c0_6 = arith.constant 0 : index
    %4 = vector.load %arg3[%c0_5, %c0_6] : memref<32x3xf32, #tpu.memory_space<vmem>>, vector<32x3xf32>
    %cst_7 = arith.constant dense<0.000000e+00> : vector<32x3xf32>
    %5 = tpu.matmul %2, %4, %cst_7 {dimension_numbers = #tpu.dot_dimension_numbers<[1], [0], [0], [1], [0, 0, 1, 1], [], []>} : vector<32x32xf32>, vector<32x3xf32>, vector<32x3xf32> -> vector<32x3xf32>
    %c0_8 = arith.constant 0 : index
    %c0_9 = arith.constant 0 : index
    %6 = vector.load %arg5[%c0_8, %c0_9] : memref<32x3xf32, #tpu.memory_space<vmem>>, vector<32x3xf32>
    tpu.vector_store %arg5[%c0_8, %c0_9], %5 {strides = array<i32>} : memref<32x3xf32, #tpu.memory_space<vmem>>, vector<32x3xf32>,
    return
  }
  func.func @transform_0(%arg0: i32) -> (i32, i32) {
    %c0_i32 = arith.constant 0 : i32
    %c0_i32_0 = arith.constant 0 : i32
    return %arg0, %c0_i32 : i32, i32
  }
  func.func @transform_1(%arg0: i32) -> (i32, i32) {
    %c0_i32 = arith.constant 0 : i32
    %c0_i32_0 = arith.constant 0 : i32
    %c0_i32_1 = arith.constant 0 : i32
    return %c0_i32, %c0_i32_0 : i32, i32
  }
  func.func @transform_2(%arg0: i32) -> (i32, i32) {
    %c0_i32 = arith.constant 0 : i32
    %c0_i32_0 = arith.constant 0 : i32
    %c0_i32_1 = arith.constant 0 : i32
    return %c0_i32, %c0_i32_0 : i32, i32
  }
  func.func @transform_3(%arg0: i32) -> (i32, i32) {
    %c0_i32 = arith.constant 0 : i32
    %c0_i32_0 = arith.constant 0 : i32
    return %arg0, %c0_i32 : i32, i32
  }
  func.func @transform_4(%arg0: i32) -> (i32, i32) {
    %c0_i32 = arith.constant 0 : i32
    %c0_i32_0 = arith.constant 0 : i32
    return %arg0, %c0_i32 : i32, i32
  }
}

</mosaic_0001>

<llo_original>
// kernel: tpu_custom_call.1
$region0: #{tpu_custom_call.1}
  #allocation0 [shape = 'u32[]', space=smem, size = 0x4, offset = 0x4, fixed_abs, tag = 'smem constant byte address 0x4 - core index']
  #allocation1 [shape = 'u32[144,128]{1,0:T(1,128)}', space=vmem, size = 0x12000, scoped, tag = 'internal scratch']
  %s0 = inlined_call_operand.vmem [shape: f32[64,16], index: 0, kind: input, shape index: {}]
  %s1 = inlined_call_operand.vmem [shape: f32[16,32], index: 1, kind: input, shape index: {}]
  %s2 = inlined_call_operand.vmem [shape: f32[32,3], index: 2, kind: input, shape index: {}]
  %s3 = inlined_call_operand.vmem [shape: f32[64,32], index: 3, kind: output, shape index: {0}]
  %s4 = inlined_call_operand.vmem [shape: f32[64,3], index: 4, kind: output, shape index: {1}]
  %5 = xla_tuple %s3, %s4
  %s6 = sld [smem:[#allocation0]]
  $region53: #{tpu_custom_call.1} parent=0
    _
  %s8 = ssub.s32 1, %s6
  %s9 = scalar_select 0, %s8, %s6
  loop: start=0, step=1, limit=4
  $region2: #{tpu_custom_call.1} parent=0 // loop_pre_header
    _
  $region3: #{tpu_custom_call.1} parent=0 // loop_header
    %s11 = sphi 0, %s15
    %p12 = scmp.ge.s32.totalorder %s11, 4
    %s21 = sphi 0, %s23
    %s24 = sphi 0, %s21
    %s25 = sphi 0, %s24
    %s41 = sphi 0, %s25
    %s45 = sphi 0, %s45
    %s47 = sphi 0, %s45
    %s48 = sphi 0, %s47
    %s62 = sphi 0, %s48
    %s66 = sphi 0, %s66
    %s68 = sphi 0, %s66
    %s69 = sphi 0, %s68
    %s83 = sphi 0, %s69
    %s89 = sphi 0, %s91
    %s92 = sphi 0, %s89
    %s93 = sphi 0, %s92
    %s109 = sphi 0, %s93
    %s115 = sphi 0, %s117
    %s118 = sphi 0, %s115
    %s119 = sphi 0, %s118
    %s135 = sphi 0, %s119
  $region4: #{tpu_custom_call.1} parent=0 // loop_header_branch
    %14 = sbr.rel (%p12) target = $region8
  $region5: #{tpu_custom_call.1} parent=0 // loop_body
    %s16 = ssub.s32 %s11, 1
    %s17 = ssub.s32 %s11, 2
    %s18 = sadd.s32 %s11, 1
    %s19 = ssub.s32 %s11, %s18
    %p20 = scmp.eq.s32.totalorder %s19, 0
    %s22 = sadd.s32 %s21, 1
    %s23 = scalar_select %p20, %s21, %s22
    %p26 = pneg %p20
    %p27 = scmp.eq.s32.totalorder %s11, 1
    %p28 = por %p26, %p27
    %p29 = scmp.ne.s32.totalorder %s21, %s24
    %p30 = scmp.eq.s32.totalorder %s11, 0
    %p31 = por %p29, %p30
    %p32 = scmp.ne.s32.totalorder %s21, %s24
    %p33 = scmp.eq.s32.totalorder %s16, 1
    %p34 = por %p32, %p33
    %p35 = scmp.ne.s32.totalorder %s24, %s25
    %p36 = scmp.eq.s32.totalorder %s16, 0
    %p37 = por %p35, %p36
    %p38 = scmp.ne.s32.totalorder %s24, %s25
    %p39 = scmp.eq.s32.totalorder %s17, 1
    %p40 = por %p38, %p39
    %p42 = scmp.ne.s32.totalorder %s25, %s41
    %p43 = scmp.eq.s32.totalorder %s17, 0
    %p44 = por %p42, %p43
    %s46 = sadd.s32 %s45, 1
    %p49 = scmp.eq.s32.totalorder %s11, 1
    %p50 = scmp.ne.s32.totalorder %s45, %s47
    %p51 = scmp.eq.s32.totalorder %s11, 0
    %p52 = por %p50, %p51
    %p53 = scmp.ne.s32.totalorder %s45, %s47
    %p54 = scmp.eq.s32.totalorder %s16, 1
    %p55 = por %p53, %p54
    %p56 = scmp.ne.s32.totalorder %s47, %s48
    %p57 = scmp.eq.s32.totalorder %s16, 0
    %p58 = por %p56, %p57
    %p59 = scmp.ne.s32.totalorder %s47, %s48
    %p60 = scmp.eq.s32.totalorder %s17, 1
    %p61 = por %p59, %p60
    %p63 = scmp.ne.s32.totalorder %s48, %s62
    %p64 = scmp.eq.s32.totalorder %s17, 0
    %p65 = por %p63, %p64
    %s67 = sadd.s32 %s66, 1
    %p70 = scmp.eq.s32.totalorder %s11, 1
    %p71 = scmp.ne.s32.totalorder %s66, %s68
    %p72 = scmp.eq.s32.totalorder %s11, 0
    %p73 = por %p71, %p72
    %p74 = scmp.ne.s32.totalorder %s66, %s68
    %p75 = scmp.eq.s32.totalorder %s16, 1
    %p76 = por %p74, %p75
    %p77 = scmp.ne.s32.totalorder %s68, %s69
    %p78 = scmp.eq.s32.totalorder %s16, 0
    %p79 = por %p77, %p78
    %p80 = scmp.ne.s32.totalorder %s68, %s69
    %p81 = scmp.eq.s32.totalorder %s17, 1
    %p82 = por %p80, %p81
    %p84 = scmp.ne.s32.totalorder %s69, %s83
    %p85 = scmp.eq.s32.totalorder %s17, 0
    %p86 = por %p84, %p85
    %s87 = ssub.s32 %s11, %s18
    %p88 = scmp.eq.s32.totalorder %s87, 0
    %s90 = sadd.s32 %s89, 1
    %s91 = scalar_select %p88, %s89, %s90
    %p94 = pneg %p88
    %p95 = scmp.eq.s32.totalorder %s11, 1
    %p96 = por %p94, %p95
    %p97 = scmp.ne.s32.totalorder %s89, %s92
    %p98 = scmp.eq.s32.totalorder %s11, 0
    %p99 = por %p97, %p98
    %p100 = scmp.ne.s32.totalorder %s89, %s92
    %p101 = scmp.eq.s32.totalorder %s16, 1
    %p102 = por %p100, %p101
    %p103 = scmp.ne.s32.totalorder %s92, %s93
    %p104 = scmp.eq.s32.totalorder %s16, 0
    %p105 = por %p103, %p104
    %p106 = scmp.ne.s32.totalorder %s92, %s93
    %p107 = scmp.eq.s32.totalorder %s17, 1
    %p108 = por %p106, %p107
    %p110 = scmp.ne.s32.totalorder %s93, %s109
    %p111 = scmp.eq.s32.totalorder %s17, 0
    %p112 = por %p110, %p111
    %s113 = ssub.s32 %s11, %s18
    %p114 = scmp.eq.s32.totalorder %s113, 0
    %s116 = sadd.s32 %s115, 1
    %s117 = scalar_select %p114, %s115, %s116
    %p120 = pneg %p114
    %p121 = scmp.eq.s32.totalorder %s11, 1
    %p122 = por %p120, %p121
    %p123 = scmp.ne.s32.totalorder %s115, %s118
    %p124 = scmp.eq.s32.totalorder %s11, 0
    %p125 = por %p123, %p124
    %p126 = scmp.ne.s32.totalorder %s115, %s118
    %p127 = scmp.eq.s32.totalorder %s16, 1
    %p128 = por %p126, %p127
    %p129 = scmp.ne.s32.totalorder %s118, %s119
    %p130 = scmp.eq.s32.totalorder %s16, 0
    %p131 = por %p129, %p130
    %p132 = scmp.ne.s32.totalorder %s118, %s119
    %p133 = scmp.eq.s32.totalorder %s17, 1
    %p134 = por %p132, %p133
    %p136 = scmp.ne.s32.totalorder %s119, %s135
    %p137 = scmp.eq.s32.totalorder %s17, 0
    %p138 = por %p136, %p137
    %p139 = scmp.le.s32.totalorder 1, %s11
    %p140 = scmp.lt.s32.totalorder %s11, 3
    %p141 = pnand %p139, %p140
    %p142 = pneg %p141
    // Predicated region
    $region9: #{tpu_custom_call.1} parent=5 // pred_check
      _
    $region10: #{tpu_custom_call.1} parent=5 // pred_check_branch
      %144 = sbr.rel (%p141) target = $region12
    $region11: #{tpu_custom_call.1} parent=5 // pred_region
      %s145 = ssub.s32 %s11, 1
      // Predicated region
      $region13: #{tpu_custom_call.1} parent=11 // pred_check
        %p146 = pneg %p58
      $region14: #{tpu_custom_call.1} parent=11 // pred_check_branch
        %148 = sbr.rel (%p146) target = $region16
      $region15: #{tpu_custom_call.1} parent=11 // pred_region
        _
      $region16: #{tpu_custom_call.1} parent=11 // pred_fallthru
        _
      // Predicated region
      $region17: #{tpu_custom_call.1} parent=11 // pred_check
        %p149 = pneg %p79
      $region18: #{tpu_custom_call.1} parent=11 // pred_check_branch
        %151 = sbr.rel (%p149) target = $region20
      $region19: #{tpu_custom_call.1} parent=11 // pred_region
        _
      $region20: #{tpu_custom_call.1} parent=11 // pred_fallthru
        _
    $region12: #{tpu_custom_call.1} parent=5 // pred_fallthru
      _
    %p152 = scmp.lt.s32.totalorder %s11, 2
    // Predicated region
    $region21: #{tpu_custom_call.1} parent=5 // pred_check
      %p153 = pneg %p152
    $region22: #{tpu_custom_call.1} parent=5 // pred_check_branch
      %155 = sbr.rel (%p153) target = $region24
    $region23: #{tpu_custom_call.1} parent=5 // pred_region
      // Predicated region
      $region25: #{tpu_custom_call.1} parent=23 // pred_check
        %p156 = pneg %p31
      $region26: #{tpu_custom_call.1} parent=23 // pred_check_branch
        %158 = sbr.rel (%p156) target = $region28
      $region27: #{tpu_custom_call.1} parent=23 // pred_region
        %s159 = smul.u32 4, %s11
        %p160 = scmp.lt.s32.totalorder %s159, 7
        %s161 = scalar_select %p160, %s159, 7
        %s162 = smul.addr %s161, 8
        %s163 = scalar_lea.vmem %s0, %s162
        %s164 = smul.u32 4, %s11
      $region28: #{tpu_custom_call.1} parent=23 // pred_fallthru
        _
    $region24: #{tpu_custom_call.1} parent=5 // pred_fallthru
      _
    %p165 = scmp.le.s32.totalorder 1, %s11
    %p166 = scmp.lt.s32.totalorder %s11, 3
    %p167 = pnand %p165, %p166
    %p168 = pneg %p167
    // Predicated region
    $region29: #{tpu_custom_call.1} parent=5 // pred_check
      _
    $region30: #{tpu_custom_call.1} parent=5 // pred_check_branch
      %170 = sbr.rel (%p167) target = $region32
    $region31: #{tpu_custom_call.1} parent=5 // pred_region
      %s171 = ssub.s32 %s11, 1
      %s172 = smul.u32 4, %s16
      %p173 = scmp.lt.s32.totalorder %s172, 7
      %s174 = scalar_select %p173, %s172, 7
      %s175 = smul.addr %s174, 8
      %s176 = scalar_lea.vmem %s0, %s175
      %p177 = pneg %p37
      %p178 = pneg %p34
      %p179 = pneg %p58
      %p180 = pneg %p55
      %p181 = pneg %p79
      %p182 = pneg %p76
      %p183 = pneg %p105
      %p184 = pneg %p102
      %s185 = smul.u32 4, %s16
      %p186 = scmp.lt.s32.totalorder %s185, 7
      %s187 = scalar_select %p186, %s185, 7
      %s188 = smul.addr %s187, 8
      %s189 = scalar_lea.vmem %s3, %s188
      %p190 = pneg %p131
      %p191 = pneg %p128
      %s192 = smul.u32 4, %s16
      %p193 = scmp.lt.s32.totalorder %s192, 7
      %s194 = scalar_select %p193, %s192, 7
      %s195 = smul.addr %s194, 8
      %s196 = scalar_lea.vmem %s4, %s195
      %s197 = smul.u32 4, %s16
      %p198 = scmp.lt.s32.totalorder %s197, 7
      %s199 = scalar_select %p198, %s197, 7
      %s200 = smul.addr %s199, 8
      %s201 = scalar_lea.vmem %s0, %s200
      %s202 = smul.u32 4, %s16
      %s203 = smul.u32 4, %s16
      %p204 = scmp.lt.s32.totalorder %s203, 7
      %s205 = scalar_select %p204, %s203, 7
      %s206 = smul.addr %s205, 8
      %s207 = scalar_lea.vmem %s3, %s206
      %s208 = smul.u32 4, %s16
      %s209 = smul.u32 4, %s16
      %p210 = scmp.lt.s32.totalorder %s209, 7
      %s211 = scalar_select %p210, %s209, 7
      %s212 = smul.addr %s211, 8
      %s213 = scalar_lea.vmem %s4, %s212
      %s214 = smul.u32 4, %s16
      %v215 = vld [vmem:[%s201] sm:$0xff]
      %v216 = vld [vmem:[%s201 + $0x8] sm:$0xff]
      %v217 = vld [vmem:[%s201 + $0x10] sm:$0xff]
      %v218 = vld [vmem:[%s201 + $0x18] sm:$0xff]
      %v219 = vld [vmem:[%s1] sm:$0xff]
      %v220 = vld [vmem:[%s1 + $0x8] sm:$0xff]
      %vm221 = vcmask 130048
      %v223 = vsel %vm221, %v215, 0
      %v226 = vsel %vm221, %v216, 0
      %v229 = vsel %vm221, %v217, 0
      %v232 = vsel %vm221, %v218, 0
      %234 = vmatprep.subr.mxu0 0.0
      %235 = vmatpush1.msra.mxu0 %v219
      %236 = vmatprep.subr.mxu0 0.0
      %237 = vmatpush1.msra.mxu0 %v220
      %238 = vmatprep.subr.mxu0 0.0
      %239 = vmatpush1.msra.mxu0 0.0
      %240 = vmatprep.subr.mxu0 0.0
      %241 = vmatpush1.msra.mxu0 0.0
      %242 = vmatprep.subr.mxu0 0.0
      %243 = vmatpush1.msra.mxu0 0.0
      %244 = vmatprep.subr.mxu0 0.0
      %245 = vmatpush1.msra.mxu0 0.0
      %246 = vmatprep.subr.mxu0 0.0
      %247 = vmatpush1.msra.mxu0 0.0
      %248 = vmatprep.subr.mxu0 0.0
      %249 = vmatpush1.msra.mxu0 0.0
      %250 = vmatprep.subr.mxu0 0.0
      %251 = vmatpush1.msra.mxu0 0.0
      %252 = vmatprep.subr.mxu0 0.0
      %253 = vmatpush1.msra.mxu0 0.0
      %254 = vmatprep.subr.mxu0 0.0
      %255 = vmatpush1.msra.mxu0 0.0
      %256 = vmatprep.subr.mxu0 0.0
      %257 = vmatpush1.msra.mxu0 0.0
      %258 = vmatprep.subr.mxu0 0.0
      %259 = vmatpush1.msra.mxu0 0.0
      %260 = vmatprep.subr.mxu0 0.0
      %261 = vmatpush1.msra.mxu0 0.0
      %262 = vmatprep.subr.mxu0 0.0
      %263 = vmatpush1.msra.mxu0 0.0
      %264 = vmatprep.subr.mxu0 0.0
      %265 = vmatpush1.msra.mxu0 0.0
      %266 = vmatprep.subr.mxu0 0.0
      %267 = vmatpush1.msra.mxu0 0.0
      %268 = vmatprep.subr.mxu0 0.0
      %269 = vmatpush1.msra.mxu0 0.0
      %270 = vmatprep.subr.mxu0 0.0
      %271 = vmatpush1.msra.mxu0 0.0
      %272 = vmatprep.subr.mxu0 0.0
      %273 = vmatpush1.msra.mxu0 0.0
      %274 = vmatprep.subr.mxu0 0.0
      %275 = vmatpush1.msra.mxu0 0.0
      %276 = vmatprep.subr.mxu0 0.0
      %277 = vmatpush1.msra.mxu0 0.0
      %278 = vmatprep.subr.mxu0 0.0
      %279 = vmatpush1.msra.mxu0 0.0
      %280 = vmatprep.subr.mxu0 0.0
      %281 = vmatpush1.msra.mxu0 0.0
      %282 = vmatprep.subr.mxu0 0.0
      %283 = vmatpush1.msra.mxu0 0.0
      %284 = vmatprep.subr.mxu0 0.0
      %285 = vmatpush1.msra.mxu0 0.0
      %286 = vmatprep.subr.mxu0 0.0
      %287 = vmatpush1.msra.mxu0 0.0
      %288 = vmatprep.subr.mxu0 0.0
      %289 = vmatpush1.msra.mxu0 0.0
      %290 = vmatprep.subr.mxu0 0.0
      %291 = vmatpush1.msra.mxu0 0.0
      %292 = vmatprep.subr.mxu0 0.0
      %293 = vmatpush1.msra.mxu0 0.0
      %294 = vmatprep.subr.mxu0 0.0
      %295 = vmatpush1.msra.mxu0 0.0
      %296 = vmatprep.subr.mxu0 0.0
      %297 = vmatpush1.msra.mxu0 0.0
      %298 = vmatprep.mubr.f32.mxu0 0.0
      %299 = vmatmul.mubr.f32.gmra.mrb[0].mxu0 %v223
      %v300 = vpop.f32.mrb[0].mxu0
      %v301 = vadd.f32 0.0, %v300
      %v302 = vpop.f32.mrb[0].mxu0
      %303 = vmatprep.mubr.f32.mxu0 0.0
      %304 = vmatmul.mubr.f32.gmra.mrb[0].mxu0 %v226
      %v305 = vpop.f32.mrb[0].mxu0
      %v306 = vadd.f32 0.0, %v305
      %v307 = vpop.f32.mrb[0].mxu0
      %308 = vmatprep.mubr.f32.mxu0 0.0
      %309 = vmatmul.mubr.f32.gmra.mrb[0].mxu0 %v229
      %v310 = vpop.f32.mrb[0].mxu0
      %v311 = vadd.f32 0.0, %v310
      %v312 = vpop.f32.mrb[0].mxu0
      %313 = vmatprep.mubr.f32.mxu0 0.0
      %314 = vmatmul.mubr.f32.gmra.mrb[0].mxu0 %v232
      %v315 = vpop.f32.mrb[0].mxu0
      %v316 = vadd.f32 0.0, %v315
      %v317 = vpop.f32.mrb[0].mxu0
      %318 = vdwg.mxu0
      %vm319 = vcmask 261120
      %320 = vst.msk [vmem:[%s207] sm:$0xff] %vm319, %v301
      %321 = vst.msk [vmem:[%s207 + $0x8] sm:$0xff] %vm319, %v306
      %322 = vst.msk [vmem:[%s207 + $0x10] sm:$0xff] %vm319, %v311
      %323 = vst.msk [vmem:[%s207 + $0x18] sm:$0xff] %vm319, %v316
      %v324 = vld [vmem:[%s2] sm:$0xff]
      %v325 = vld [vmem:[%s2 + $0x8] sm:$0xff]
      %v326 = vld [vmem:[%s2 + $0x10] sm:$0xff]
      %v327 = vld [vmem:[%s2 + $0x18] sm:$0xff]
      %v329 = vsel %vm319, %v301, 0
      %v332 = vsel %vm319, %v306, 0
      %v335 = vsel %vm319, %v311, 0
      %v338 = vsel %vm319, %v316, 0
      %340 = vmatprep.subr.mxu0 0.0
      %341 = vmatpush1.msra.mxu0 %v324
      %342 = vmatprep.subr.mxu0 0.0
      %343 = vmatpush1.msra.mxu0 %v325
      %344 = vmatprep.subr.mxu0 0.0
      %345 = vmatpush1.msra.mxu0 %v326
      %346 = vmatprep.subr.mxu0 0.0
      %347 = vmatpush1.msra.mxu0 %v327
      %348 = vmatprep.subr.mxu0 0.0
      %349 = vmatpush1.msra.mxu0 0.0
      %350 = vmatprep.subr.mxu0 0.0
      %351 = vmatpush1.msra.mxu0 0.0
      %352 = vmatprep.subr.mxu0 0.0
      %353 = vmatpush1.msra.mxu0 0.0
      %354 = vmatprep.subr.mxu0 0.0
      %355 = vmatpush1.msra.mxu0 0.0
      %356 = vmatprep.subr.mxu0 0.0
      %357 = vmatpush1.msra.mxu0 0.0
      %358 = vmatprep.subr.mxu0 0.0
      %359 = vmatpush1.msra.mxu0 0.0
      %360 = vmatprep.subr.mxu0 0.0
      %361 = vmatpush1.msra.mxu0 0.0
      %362 = vmatprep.subr.mxu0 0.0
      %363 = vmatpush1.msra.mxu0 0.0
      %364 = vmatprep.subr.mxu0 0.0
      %365 = vmatpush1.msra.mxu0 0.0
      %366 = vmatprep.subr.mxu0 0.0
      %367 = vmatpush1.msra.mxu0 0.0
      %368 = vmatprep.subr.mxu0 0.0
      %369 = vmatpush1.msra.mxu0 0.0
      %370 = vmatprep.subr.mxu0 0.0
      %371 = vmatpush1.msra.mxu0 0.0
      %372 = vmatprep.subr.mxu0 0.0
      %373 = vmatpush1.msra.mxu0 0.0
      %374 = vmatprep.subr.mxu0 0.0
      %375 = vmatpush1.msra.mxu0 0.0
      %376 = vmatprep.subr.mxu0 0.0
      %377 = vmatpush1.msra.mxu0 0.0
      %378 = vmatprep.subr.mxu0 0.0
      %379 = vmatpush1.msra.mxu0 0.0
      %380 = vmatprep.subr.mxu0 0.0
      %381 = vmatpush1.msra.mxu0 0.0
      %382 = vmatprep.subr.mxu0 0.0
      %383 = vmatpush1.msra.mxu0 0.0
      %384 = vmatprep.subr.mxu0 0.0
      %385 = vmatpush1.msra.mxu0 0.0
      %386 = vmatprep.subr.mxu0 0.0
      %387 = vmatpush1.msra.mxu0 0.0
      %388 = vmatprep.subr.mxu0 0.0
      %389 = vmatpush1.msra.mxu0 0.0
      %390 = vmatprep.subr.mxu0 0.0
      %391 = vmatpush1.msra.mxu0 0.0
      %392 = vmatprep.subr.mxu0 0.0
      %393 = vmatpush1.msra.mxu0 0.0
      %394 = vmatprep.subr.mxu0 0.0
      %395 = vmatpush1.msra.mxu0 0.0
      %396 = vmatprep.subr.mxu0 0.0
      %397 = vmatpush1.msra.mxu0 0.0
      %398 = vmatprep.subr.mxu0 0.0
      %399 = vmatpush1.msra.mxu0 0.0
      %400 = vmatprep.subr.mxu0 0.0
      %401 = vmatpush1.msra.mxu0 0.0
      %402 = vmatprep.subr.mxu0 0.0
      %403 = vmatpush1.msra.mxu0 0.0
      %404 = vmatprep.mubr.f32.mxu0 0.0
      %405 = vmatmul.mubr.f32.gmra.mrb[0].mxu0 %v329
      %v406 = vpop.f32.mrb[0].mxu0
      %v407 = vadd.f32 0.0, %v406
      %v408 = vpop.f32.mrb[0].mxu0
      %409 = vmatprep.mubr.f32.mxu0 0.0
      %410 = vmatmul.mubr.f32.gmra.mrb[0].mxu0 %v332
      %v411 = vpop.f32.mrb[0].mxu0
      %v412 = vadd.f32 0.0, %v411
      %v413 = vpop.f32.mrb[0].mxu0
      %414 = vmatprep.mubr.f32.mxu0 0.0
      %415 = vmatmul.mubr.f32.gmra.mrb[0].mxu0 %v335
      %v416 = vpop.f32.mrb[0].mxu0
      %v417 = vadd.f32 0.0, %v416
      %v418 = vpop.f32.mrb[0].mxu0
      %419 = vmatprep.mubr.f32.mxu0 0.0
      %420 = vmatmul.mubr.f32.gmra.mrb[0].mxu0 %v338
      %v421 = vpop.f32.mrb[0].mxu0
      %v422 = vadd.f32 0.0, %v421
      %v423 = vpop.f32.mrb[0].mxu0
      %424 = vdwg.mxu0
      %vm425 = vcmask 23552
      %426 = vst.msk [vmem:[%s213] sm:$0xff] %vm425, %v407
      %427 = vst.msk [vmem:[%s213 + $0x8] sm:$0xff] %vm425, %v412
      %428 = vst.msk [vmem:[%s213 + $0x10] sm:$0xff] %vm425, %v417
      %429 = vst.msk [vmem:[%s213 + $0x18] sm:$0xff] %vm425, %v422
      %s430 = smul.u32 4, %s16
      %p431 = scmp.lt.s32.totalorder %s430, 7
      %s432 = scalar_select %p431, %s430, 7
      %s433 = smul.addr %s432, 8
      %s434 = scalar_lea.vmem %s3, %s433
      %s435 = smul.u32 4, %s16
      %p436 = scmp.lt.s32.totalorder %s435, 7
      %s437 = scalar_select %p436, %s435, 7
      %s438 = smul.addr %s437, 8
      %s439 = scalar_lea.vmem %s4, %s438
      // Predicated region
      $region33: #{tpu_custom_call.1} parent=31 // pred_check
        %p440 = pneg %p102
      $region34: #{tpu_custom_call.1} parent=31 // pred_check_branch
        %442 = sbr.rel (%p440) target = $region36
      $region35: #{tpu_custom_call.1} parent=31 // pred_region
        %s443 = smul.u32 4, %s16
      $region36: #{tpu_custom_call.1} parent=31 // pred_fallthru
        _
      // Predicated region
      $region37: #{tpu_custom_call.1} parent=31 // pred_check
        %p444 = pneg %p128
      $region38: #{tpu_custom_call.1} parent=31 // pred_check_branch
        %446 = sbr.rel (%p444) target = $region40
      $region39: #{tpu_custom_call.1} parent=31 // pred_region
        %s447 = smul.u32 4, %s16
      $region40: #{tpu_custom_call.1} parent=31 // pred_fallthru
        _
    $region32: #{tpu_custom_call.1} parent=5 // pred_fallthru
      _
    %p448 = scmp.le.s32.totalorder 2, %s11
    // Predicated region
    $region41: #{tpu_custom_call.1} parent=5 // pred_check
      %p449 = pneg %p448
    $region42: #{tpu_custom_call.1} parent=5 // pred_check_branch
      %451 = sbr.rel (%p449) target = $region44
    $region43: #{tpu_custom_call.1} parent=5 // pred_region
      %s452 = ssub.s32 %s11, 2
      // Predicated region
      $region45: #{tpu_custom_call.1} parent=43 // pred_check
        %p453 = pneg %p108
      $region46: #{tpu_custom_call.1} parent=43 // pred_check_branch
        %455 = sbr.rel (%p453) target = $region48
      $region47: #{tpu_custom_call.1} parent=43 // pred_region
        %s456 = smul.u32 4, %s17
        %p457 = scmp.lt.s32.totalorder %s456, 7
        %s458 = scalar_select %p457, %s456, 7
        %s459 = smul.addr %s458, 8
        %s460 = scalar_lea.vmem %s3, %s459
      $region48: #{tpu_custom_call.1} parent=43 // pred_fallthru
        _
      // Predicated region
      $region49: #{tpu_custom_call.1} parent=43 // pred_check
        %p461 = pneg %p134
      $region50: #{tpu_custom_call.1} parent=43 // pred_check_branch
        %463 = sbr.rel (%p461) target = $region52
      $region51: #{tpu_custom_call.1} parent=43 // pred_region
        %s464 = smul.u32 4, %s17
        %p465 = scmp.lt.s32.totalorder %s464, 7
        %s466 = scalar_select %p465, %s464, 7
        %s467 = smul.addr %s466, 8
        %s468 = scalar_lea.vmem %s4, %s467
      $region52: #{tpu_custom_call.1} parent=43 // pred_fallthru
        _
    $region44: #{tpu_custom_call.1} parent=5 // pred_fallthru
      _
  $region6: #{tpu_custom_call.1} parent=0 // loop_footer
    %s15 = sadd.s32 1, %s11
  $region7: #{tpu_custom_call.1} parent=0 // loop_footer_branch
    %10 = sbr.rel target = $region3
  $region8: #{tpu_custom_call.1} parent=0 // loop_exit
    _

</llo_original>
